<compile_context>
chip_gen: v6e
topology: v6e:2x2x1
jax: 0.10.0
libtpu: 0.0.40
codegen_flags: <defaults>
</compile_context>

<pallas_src>
import functools

import jax
import jax.numpy as jnp
from jax import lax
from jax.experimental import pallas as pl
from jax.experimental.pallas import tpu as pltpu


def _round_up(x, m):
    return ((x + m - 1) // m) * m


def _sublane_multiple(dtype):
    # Minimum second-minor tile for the output block: f32 -> 8, bf16 -> 16, int8 -> 32.
    return max(8, 32 // jnp.dtype(dtype).itemsize)


def pad_table(table):
    """Pad the embedding dim up to a multiple of 128 lanes.

    Call ONCE outside the hot (jitted) path so the pad isn't re-done per call.
    """
    V, D = table.shape
    D_pad = _round_up(D, 128)
    if D_pad == D:
        return table
    return jnp.pad(table, ((0, 0), (0, D_pad - D)))


def embed_onehot_kernel(idx_ref, tab_ref, out_ref):
    # idx_ref: (1, TM) int32 — token ids for this tile (leading grid dim squeezed).
    # tab_ref: (V, D_pad)    — full embedding table, VMEM-resident every step.
    # out_ref: (TM, D_pad)   — lane/sublane-dense output tile (unmasked stores).
    v = tab_ref.shape[0]
    tm = out_ref.shape[0]

    idx = idx_ref[...]                                       # (1, TM)
    # Transposed one-hot (V, TM): one_hot_t[j, r] = (j == idx[r]).  Building it
    # transposed needs only a sublane broadcast of the (1, TM) id row — no
    # lane<->sublane relayout of the indices.
    row_ids = lax.broadcasted_iota(jnp.int32, (v, tm), 0)
    one_hot_t = (row_ids == idx).astype(tab_ref.dtype)       # (V, TM)

    # Gather as an MXU matmul: out[r, d] = sum_j one_hot_t[j, r] * tab[j, d].
    # Contracting the lhs on dim 0 is the MXU-native trans_a form.  HIGHEST
    # precision keeps the f32 lookup bit-exact (pure 0/1 selection).
    out = lax.dot_general(
        one_hot_t, tab_ref[...],
        dimension_numbers=(((0,), (0,)), ((), ())),
        preferred_element_type=jnp.float32,
        precision=lax.Precision.HIGHEST,
    )                                                        # (TM, D_pad)
    out_ref[...] = out.astype(out_ref.dtype)


def tagnet_forward(x, table, *, embedding_dim=None, tm=512):
    """Equivalent of TagNet.forward: embedding lookup table[x] -> x.shape + (D,).

    `table` may already be lane-padded (see pad_table); pass `embedding_dim`
    to slice back to the original feature width.
    """
    V, D_stored = table.shape
    D = int(embedding_dim) if embedding_dim is not None else D_stored
    dtype = table.dtype
    itemsize = jnp.dtype(dtype).itemsize

    D_pad = _round_up(D_stored, 128)
    if D_pad != D_stored:
        # Prefer pre-padding with pad_table() outside jit; kept as a fallback.
        table = jnp.pad(table, ((0, 0), (0, D_pad - D_stored)))

    # --- Flatten + sanitize indices. ---
    # NOTE: torch raises on out-of-range ids; we clamp (semantics change, documented).
    # NOTE: int64 ids >= 2^31 would truncate on the int32 cast.
    flat_idx = jnp.clip(x.reshape(-1).astype(jnp.int32), 0, V - 1)
    N = flat_idx.shape[0]
    if N == 0:
        return jnp.zeros(x.shape + (D,), dtype)

    # --- Token tile: multiple of the dtype's sublane tile, <= tm, and capped so
    # the "parallel" grid axis has >= 2 steps (keeps both v7x TensorCores busy).
    sub = _sublane_multiple(dtype)
    tile = max(sub, min(tm, _round_up(N, sub)))
    tile = _round_up(tile, sub)
    if N >= 2 * sub:
        tile = min(tile, _round_up(-(-N // 2), sub))

    N_pad = _round_up(N, tile)
    if N_pad != N:
        flat_idx = jnp.pad(flat_idx, (0, N_pad - N))          # pad with id 0 (in range)
    grid = (N_pad // tile,)
    idx_tiles = flat_idx.reshape(grid[0], 1, tile)

    cost = pl.CostEstimate(
        flops=2 * N_pad * V * D_pad,                          # one-hot @ table
        transcendentals=0,
        bytes_accessed=(N_pad * D_pad * itemsize              # output write
                        + V * D_pad * itemsize                # table read (once)
                        + N_pad * 4),                         # indices
    )

    # VMEM budget: full table is resident across the grid (constant index_map);
    # ~96 KiB here plus a <=1 MiB double-buffered output tile — far under even
    # v7x's 64 MiB VMEM / 32 MiB scoped default.
    # TODO(synk): switch to a DMA-gather design (memory_space=pl.ANY +
    # pltpu.make_async_copy per needed row block) if the vocab table ever grows
    # to multi-MiB sizes.

    out_flat = pl.pallas_call(
        embed_onehot_kernel,
        out_shape=jax.ShapeDtypeStruct((N_pad, D_pad), dtype),
        grid_spec=pltpu.PrefetchScalarGridSpec(
            num_scalar_prefetch=0,
            grid=grid,
            in_specs=[
                # (1, tile) index block per step; leading grid dim squeezed away.
                pl.BlockSpec((None, 1, tile), lambda i: (i, 0, 0)),
                # Whole table, VMEM-resident for all steps (constant index_map).
                pl.BlockSpec((V, D_pad), lambda i: (0, 0)),
            ],
            out_specs=pl.BlockSpec((tile, D_pad), lambda i: (i, 0)),
        ),
        compiler_params=pltpu.CompilerParams(
            dimension_semantics=("parallel",),                # independent token tiles
        ),
        cost_estimate=cost,
    )(idx_tiles, table)

    return out_flat[:N, :D].reshape(x.shape + (D,))


def init_tagnet_params(num_embeddings, embedding_dim, key):
    # nn.Embedding default init: weight ~ N(0, 1), shape (V, D).
    return jax.random.normal(key, (num_embeddings, embedding_dim), jnp.float32)


if __name__ == "__main__":
    num_embeddings = 64
    embedding_dim = 300          # PyTorch-style dim; exercises the pad-to-384 path

    key = jax.random.PRNGKey(0)
    k_w, k_x = jax.random.split(key)

    table = init_tagnet_params(num_embeddings, embedding_dim, k_w)
    table_p = pad_table(table)   # pad once, outside the jitted hot path
    x = jax.random.randint(k_x, (2, 8), 0, num_embeddings, dtype=jnp.int32)

    fwd = jax.jit(functools.partial(tagnet_forward,
                                    embedding_dim=embedding_dim, tm=512))
    out = jax.block_until_ready(fwd(x, table_p))

    # Reference check against plain JAX gather (== torch nn.Embedding forward).
    ref = table[x]
    assert out.shape == (2, 8, embedding_dim), out.shape
    assert out.dtype == jnp.float32
    assert jnp.allclose(out, ref), "mismatch vs reference gather"

    print("KERNEL_OK")
</pallas_src>

<mosaic_0001>
module attributes {stable_mosaic.version = 11 : i64} {
  func.func @embed_onehot_kernel(%arg0: i32, %arg1: memref<1x1x8xi32, #tpu.memory_space<vmem>>, %arg2: memref<64x384xf32, #tpu.memory_space<vmem>>, %arg3: memref<8x384xf32, #tpu.memory_space<vmem>>) attributes {dimension_semantics = [#tpu.dimension_semantics<parallel>], iteration_bounds = array<i64: 2>, scalar_prefetch = 0 : i64, scratch_operands = 0 : i64, tpu.core_type = #tpu.core_type<tc>, window_params = [{transform_indices = @transform_0, window_bounds = array<i64: 1, 1, 8>}, {pipeline_mode = #tpu.pipeline_mode<synchronous>, transform_indices = @transform_1, window_bounds = array<i64: 64, 384>}, {transform_indices = @transform_2, window_bounds = array<i64: 8, 384>}]} {
    %c0 = arith.constant 0 : index
    %c0_0 = arith.constant 0 : index
    %c0_1 = arith.constant 0 : index
    %0 = vector.load %arg1[%c0, %c0_0, %c0_1] : memref<1x1x8xi32, #tpu.memory_space<vmem>>, vector<1x1x8xi32>
    %1 = vector.shape_cast %0 : vector<1x1x8xi32> to vector<1x8xi32>
    %2 = tpu.iota {dimensions = array<i32: 0>} : vector<64x8xi32>
    %3 = vector.broadcast %1 : vector<1x8xi32> to vector<64x8xi32>
    %4 = arith.cmpi eq, %2, %3 : vector<64x8xi32>
    %5 = arith.extui %4 : vector<64x8xi1> to vector<64x8xi32>
    %6 = arith.sitofp %5 : vector<64x8xi32> to vector<64x8xf32>
    %c0_2 = arith.constant 0 : index
    %c0_3 = arith.constant 0 : index
    %7 = vector.load %arg2[%c0_2, %c0_3] : memref<64x384xf32, #tpu.memory_space<vmem>>, vector<64x384xf32>
    %cst = arith.constant dense<0.000000e+00> : vector<8x384xf32>
    %8 = tpu.matmul %6, %7, %cst {dimension_numbers = #tpu.dot_dimension_numbers<[0], [0], [1], [1], [0, 1, 1, 1], [], []>, precision = #tpu.contract_precision<fp32>} : vector<64x8xf32>, vector<64x384xf32>, vector<8x384xf32> -> vector<8x384xf32>
    %c0_4 = arith.constant 0 : index
    %c0_5 = arith.constant 0 : index
    %9 = vector.load %arg3[%c0_4, %c0_5] : memref<8x384xf32, #tpu.memory_space<vmem>>, vector<8x384xf32>
    tpu.vector_store %arg3[%c0_4, %c0_5], %8 {strides = array<i32>} : memref<8x384xf32, #tpu.memory_space<vmem>>, vector<8x384xf32>,
    return
  }
  func.func @transform_0(%arg0: i32) -> (i32, i32, i32) {
    %c0_i32 = arith.constant 0 : i32
    %c0_i32_0 = arith.constant 0 : i32
    %c0_i32_1 = arith.constant 0 : i32
    return %arg0, %c0_i32, %c0_i32_0 : i32, i32, i32
  }
  func.func @transform_1(%arg0: i32) -> (i32, i32) {
    %c0_i32 = arith.constant 0 : i32
    %c0_i32_0 = arith.constant 0 : i32
    %c0_i32_1 = arith.constant 0 : i32
    return %c0_i32, %c0_i32_0 : i32, i32
  }
  func.func @transform_2(%arg0: i32) -> (i32, i32) {
    %c0_i32 = arith.constant 0 : i32
    %c0_i32_0 = arith.constant 0 : i32
    return %arg0, %c0_i32 : i32, i32
  }
}

</mosaic_0001>

<llo_original>
// kernel: tagnet_forward.1
$region0: #{tagnet_forward.1}
  #allocation0 [shape = 'u32[]', space=smem, size = 0x4, offset = 0x4, fixed_abs, tag = 'smem constant byte address 0x4 - core index']
  #allocation1 [shape = 'u32[144,128]{1,0:T(1,128)}', space=vmem, size = 0x12000, scoped, tag = 'internal scratch']
  %s0 = inlined_call_operand.vmem [shape: s32[2,1,8], index: 0, kind: input, shape index: {}]
  %s1 = inlined_call_operand.hbm [shape: f32[64,384], index: 1, kind: input, shape index: {}]
  %s2 = inlined_call_operand.vmem [shape: f32[16,384], index: 2, kind: output, shape index: {}]
  %s3 = sld [smem:[#allocation0]]
  $region45: #{tagnet_forward.1} parent=0
    _
  %s5 = ssub.s32 1, %s3
  %s6 = scalar_select 0, %s5, %s3
  $region1: #{tagnet_forward.1} parent=0
    #allocation2 [shape = 'u8[98304]{0}', space=vmem, size = 0x18000, scoped, tag = 'input window, operand 1, single buffered']
    #allocation3 [shape = 's32[2]{0}', space=sflag, size = 0x8, scoped, tag = 'scoped memory for tagnet_forward.1']
    %7 = vsyncpa [#allocation3], 0
    loop: start=0, step=1, limit=4
    $region2: #{tagnet_forward.1} parent=1 // loop_pre_header
      _
    $region3: #{tagnet_forward.1} parent=1 // loop_header
      %s9 = sphi 0, %s13
      %p10 = scmp.ge.s32.totalorder %s9, 4
      %s19 = sphi 0, %s21
      %s22 = sphi 0, %s19
      %s23 = sphi 0, %s22
      %s39 = sphi 0, %s23
      %s43 = sphi 0, %s43
      %s45 = sphi 0, %s43
      %s46 = sphi 0, %s45
      %s60 = sphi 0, %s46
      %s66 = sphi 0, %s68
      %s69 = sphi 0, %s66
      %s70 = sphi 0, %s69
      %s86 = sphi 0, %s70
    $region4: #{tagnet_forward.1} parent=1 // loop_header_branch
      %12 = sbr.rel (%p10) target = $region8
    $region5: #{tagnet_forward.1} parent=1 // loop_body
      %s14 = ssub.s32 %s9, 1
      %s15 = ssub.s32 %s9, 2
      %s16 = sadd.s32 %s9, 1
      %s17 = ssub.s32 %s9, %s16
      %p18 = scmp.eq.s32.totalorder %s17, 0
      %s20 = sadd.s32 %s19, 1
      %s21 = scalar_select %p18, %s19, %s20
      %p24 = pneg %p18
      %p25 = scmp.eq.s32.totalorder %s9, 1
      %p26 = por %p24, %p25
      %p27 = scmp.ne.s32.totalorder %s19, %s22
      %p28 = scmp.eq.s32.totalorder %s9, 0
      %p29 = por %p27, %p28
      %p30 = scmp.ne.s32.totalorder %s19, %s22
      %p31 = scmp.eq.s32.totalorder %s14, 1
      %p32 = por %p30, %p31
      %p33 = scmp.ne.s32.totalorder %s22, %s23
      %p34 = scmp.eq.s32.totalorder %s14, 0
      %p35 = por %p33, %p34
      %p36 = scmp.ne.s32.totalorder %s22, %s23
      %p37 = scmp.eq.s32.totalorder %s15, 1
      %p38 = por %p36, %p37
      %p40 = scmp.ne.s32.totalorder %s23, %s39
      %p41 = scmp.eq.s32.totalorder %s15, 0
      %p42 = por %p40, %p41
      %s44 = sadd.s32 %s43, 1
      %p47 = scmp.eq.s32.totalorder %s9, 1
      %p48 = scmp.ne.s32.totalorder %s43, %s45
      %p49 = scmp.eq.s32.totalorder %s9, 0
      %p50 = por %p48, %p49
      %p51 = scmp.ne.s32.totalorder %s43, %s45
      %p52 = scmp.eq.s32.totalorder %s14, 1
      %p53 = por %p51, %p52
      %p54 = scmp.ne.s32.totalorder %s45, %s46
      %p55 = scmp.eq.s32.totalorder %s14, 0
      %p56 = por %p54, %p55
      %p57 = scmp.ne.s32.totalorder %s45, %s46
      %p58 = scmp.eq.s32.totalorder %s15, 1
      %p59 = por %p57, %p58
      %p61 = scmp.ne.s32.totalorder %s46, %s60
      %p62 = scmp.eq.s32.totalorder %s15, 0
      %p63 = por %p61, %p62
      %s64 = ssub.s32 %s9, %s16
      %p65 = scmp.eq.s32.totalorder %s64, 0
      %s67 = sadd.s32 %s66, 1
      %s68 = scalar_select %p65, %s66, %s67
      %p71 = pneg %p65
      %p72 = scmp.eq.s32.totalorder %s9, 1
      %p73 = por %p71, %p72
      %p74 = scmp.ne.s32.totalorder %s66, %s69
      %p75 = scmp.eq.s32.totalorder %s9, 0
      %p76 = por %p74, %p75
      %p77 = scmp.ne.s32.totalorder %s66, %s69
      %p78 = scmp.eq.s32.totalorder %s14, 1
      %p79 = por %p77, %p78
      %p80 = scmp.ne.s32.totalorder %s69, %s70
      %p81 = scmp.eq.s32.totalorder %s14, 0
      %p82 = por %p80, %p81
      %p83 = scmp.ne.s32.totalorder %s69, %s70
      %p84 = scmp.eq.s32.totalorder %s15, 1
      %p85 = por %p83, %p84
      %p87 = scmp.ne.s32.totalorder %s70, %s86
      %p88 = scmp.eq.s32.totalorder %s15, 0
      %p89 = por %p87, %p88
      %p90 = scmp.le.s32.totalorder 1, %s9
      %p91 = scmp.lt.s32.totalorder %s9, 3
      %p92 = pnand %p90, %p91
      %p93 = pneg %p92
      // Predicated region
      $region9: #{tagnet_forward.1} parent=5 // pred_check
        _
      $region10: #{tagnet_forward.1} parent=5 // pred_check_branch
        %95 = sbr.rel (%p92) target = $region12
      $region11: #{tagnet_forward.1} parent=5 // pred_region
        %s96 = ssub.s32 %s9, 1
        // Predicated region
        $region13: #{tagnet_forward.1} parent=11 // pred_check
          %p97 = pneg %p56
        $region14: #{tagnet_forward.1} parent=11 // pred_check_branch
          %99 = sbr.rel (%p97) target = $region16
        $region15: #{tagnet_forward.1} parent=11 // pred_region
          %s101 = ssub.s32 3072, 3072
          %102 = vsyncadd [#allocation3], %s101
          %s103 = sshll.u32 [#allocation2], 4
          %s104 = int_to_ptr.vmem [resolvable:$true] %s103
          %109 = dma.hbm_to_vmem [thread:$0]  %s1, 3072, %s104, [#allocation3], 384, 384, 24
        $region16: #{tagnet_forward.1} parent=11 // pred_fallthru
          _
      $region12: #{tagnet_forward.1} parent=5 // pred_fallthru
        _
      %p110 = scmp.lt.s32.totalorder %s9, 2
      // Predicated region
      $region17: #{tagnet_forward.1} parent=5 // pred_check
        %p111 = pneg %p110
      $region18: #{tagnet_forward.1} parent=5 // pred_check_branch
        %113 = sbr.rel (%p111) target = $region20
      $region19: #{tagnet_forward.1} parent=5 // pred_region
        // Predicated region
        $region21: #{tagnet_forward.1} parent=19 // pred_check
          %p114 = pneg %p29
        $region22: #{tagnet_forward.1} parent=19 // pred_check_branch
          %116 = sbr.rel (%p114) target = $region24
        $region23: #{tagnet_forward.1} parent=19 // pred_region
          %p117 = scmp.lt.s32.totalorder %s9, 1
          %s118 = scalar_select %p117, %s9, 1
          %s119 = scalar_lea.vmem %s0, %s118
        $region24: #{tagnet_forward.1} parent=19 // pred_fallthru
          _
      $region20: #{tagnet_forward.1} parent=5 // pred_fallthru
        _
      %p120 = scmp.le.s32.totalorder 1, %s9
      %p121 = scmp.lt.s32.totalorder %s9, 3
      %p122 = pnand %p120, %p121
      %p123 = pneg %p122
      // Predicated region
      $region25: #{tagnet_forward.1} parent=5 // pred_check
        _
      $region26: #{tagnet_forward.1} parent=5 // pred_check_branch
        %125 = sbr.rel (%p122) target = $region28
      $region27: #{tagnet_forward.1} parent=5 // pred_region
        %s126 = ssub.s32 %s9, 1
        // Predicated region
        $region29: #{tagnet_forward.1} parent=27 // pred_check
          %p127 = pneg %p56
        $region30: #{tagnet_forward.1} parent=27 // pred_check_branch
          %129 = sbr.rel (%p127) target = $region32
        $region31: #{tagnet_forward.1} parent=27 // pred_region
          %130 = dma.done [#allocation3], 3072
        $region32: #{tagnet_forward.1} parent=27 // pred_fallthru
          _
        %p131 = scmp.lt.s32.totalorder %s14, 1
        %s132 = scalar_select %p131, %s14, 1
        %s133 = scalar_lea.vmem %s0, %s132
        %p134 = pneg %p35
        %p135 = pneg %p32
        %p136 = pneg %p56
        %p137 = pneg %p53
        %p138 = pneg %p82
        %p139 = pneg %p79
        %p140 = scmp.lt.s32.totalorder %s14, 1
        %s141 = scalar_select %p140, %s14, 1
        %s142 = smul.addr %s141, 3
        %s143 = smul.addr %s142, 8
        %s144 = scalar_lea.vmem %s2, %s143
        %p145 = scmp.lt.s32.totalorder %s14, 1
        %s146 = scalar_select %p145, %s14, 1
        %s147 = scalar_lea.vmem %s0, %s146
        %p148 = scmp.lt.s32.totalorder %s14, 1
        %s149 = scalar_select %p148, %s14, 1
        %s150 = smul.addr %s149, 3
        %s151 = smul.addr %s150, 8
        %s152 = scalar_lea.vmem %s2, %s151
        %v153 = vld [vmem:[%s147] sm:$0x1]
        %v154 = vlaneseq
        %v155 = vshrl.u32 %v154, 7
        %v156 = vadd.s32 %v155, 8
        %v157 = vadd.s32 %v155, 16
        %v158 = vadd.s32 %v155, 24
        %v159 = vadd.s32 %v155, 32
        %v160 = vadd.s32 %v155, 40
        %v161 = vadd.s32 %v155, 48
        %v162 = vadd.s32 %v155, 56
        %v163 = vlaneseq
        %v164 = vshrl.u32 %v163, 7
        %v165 = vsub.s32 0, %v164
        %v166 = vrot.slane %v153, %v165
        %vm167 = vcmp.eq.s32.totalorder %v155, %v166
        %vm168 = vcmp.eq.s32.totalorder %v156, %v166
        %vm169 = vcmp.eq.s32.totalorder %v157, %v166
        %vm170 = vcmp.eq.s32.totalorder %v158, %v166
        %vm171 = vcmp.eq.s32.totalorder %v159, %v166
        %vm172 = vcmp.eq.s32.totalorder %v160, %v166
        %vm173 = vcmp.eq.s32.totalorder %v161, %v166
        %vm174 = vcmp.eq.s32.totalorder %v162, %v166
        %v175 = vsel %vm167, 1, 0
        %v176 = vsel %vm168, 1, 0
        %v177 = vsel %vm169, 1, 0
        %v178 = vsel %vm170, 1, 0
        %v179 = vsel %vm171, 1, 0
        %v180 = vsel %vm172, 1, 0
        %v181 = vsel %vm173, 1, 0
        %v182 = vsel %vm174, 1, 0
        %v183 = vcvt.s32.f32 %v175
        %v184 = vcvt.s32.f32 %v176
        %v185 = vcvt.s32.f32 %v177
        %v186 = vcvt.s32.f32 %v178
        %v187 = vcvt.s32.f32 %v179
        %v188 = vcvt.s32.f32 %v180
        %v189 = vcvt.s32.f32 %v181
        %v190 = vcvt.s32.f32 %v182
        %v191 = vld [vmem:[#allocation2] sm:$0xff]
        %v192 = vld [vmem:[#allocation2 + $0x8] sm:$0xff]
        %v193 = vld [vmem:[#allocation2 + $0x10] sm:$0xff]
        %v194 = vld [vmem:[#allocation2 + $0x18] sm:$0xff]
        %v195 = vld [vmem:[#allocation2 + $0x20] sm:$0xff]
        %v196 = vld [vmem:[#allocation2 + $0x28] sm:$0xff]
        %v197 = vld [vmem:[#allocation2 + $0x30] sm:$0xff]
        %v198 = vld [vmem:[#allocation2 + $0x38] sm:$0xff]
        %v199 = vld [vmem:[#allocation2 + $0x40] sm:$0xff]
        %v200 = vld [vmem:[#allocation2 + $0x48] sm:$0xff]
        %v201 = vld [vmem:[#allocation2 + $0x50] sm:$0xff]
        %v202 = vld [vmem:[#allocation2 + $0x58] sm:$0xff]
        %v203 = vld [vmem:[#allocation2 + $0x60] sm:$0xff]
        %v204 = vld [vmem:[#allocation2 + $0x68] sm:$0xff]
        %v205 = vld [vmem:[#allocation2 + $0x70] sm:$0xff]
        %v206 = vld [vmem:[#allocation2 + $0x78] sm:$0xff]
        %v207 = vld [vmem:[#allocation2 + $0x80] sm:$0xff]
        %v208 = vld [vmem:[#allocation2 + $0x88] sm:$0xff]
        %v209 = vld [vmem:[#allocation2 + $0x90] sm:$0xff]
        %v210 = vld [vmem:[#allocation2 + $0x98] sm:$0xff]
        %v211 = vld [vmem:[#allocation2 + $0xa0] sm:$0xff]
        %v212 = vld [vmem:[#allocation2 + $0xa8] sm:$0xff]
        %v213 = vld [vmem:[#allocation2 + $0xb0] sm:$0xff]
        %v214 = vld [vmem:[#allocation2 + $0xb8] sm:$0xff]
        %215 = vxpose.xlu0.b32.start [1/16] %v183, 128
        %216 = vxpose.xlu0.b32.cont [2/16] %v184, 128
        %217 = vxpose.xlu0.b32.cont [3/16] %v185, 128
        %218 = vxpose.xlu0.b32.cont [4/16] %v186, 128
        %219 = vxpose.xlu0.b32.cont [5/16] %v187, 128
        %220 = vxpose.xlu0.b32.cont [6/16] %v188, 128
        %221 = vxpose.xlu0.b32.cont [7/16] %v189, 128
        %222 = vxpose.xlu0.b32.cont [8/16] %v190, 128
        %223 = vxpose.xlu0.b32.cont [9/16] 0.0, 128
        %224 = vxpose.xlu0.b32.cont [10/16] 0.0, 128
        %225 = vxpose.xlu0.b32.cont [11/16] 0.0, 128
        %226 = vxpose.xlu0.b32.cont [12/16] 0.0, 128
        %227 = vxpose.xlu0.b32.cont [13/16] 0.0, 128
        %228 = vxpose.xlu0.b32.cont [14/16] 0.0, 128
        %229 = vxpose.xlu0.b32.cont [15/16] 0.0, 128
        %230 = vxpose.xlu0.b32.end [16/16] 0.0, 128
        %v231 = vpop.trf.xlu0
        %v232 = vpop.trf.xlu0
        %v233 = vpop.trf.xlu0
        %v234 = vpop.trf.xlu0
        %v235 = vpop.trf.xlu0
        %v236 = vpop.trf.xlu0
        %v237 = vpop.trf.xlu0
        %v238 = vpop.trf.xlu0
        %v239 = vpop.trf.xlu0
        %v240 = vpop.trf.xlu0
        %v241 = vpop.trf.xlu0
        %v242 = vpop.trf.xlu0
        %v243 = vpop.trf.xlu0
        %v244 = vpop.trf.xlu0
        %v245 = vpop.trf.xlu0
        %v246 = vpop.trf.xlu0
        %vm247 = vcmask 523264
        %v249 = vsel %vm247, %v231, 0
        %251 = vmatprep.subr.mxu0 0.0
        %252 = vmatpush1.msra.mxu0 0.0
        %253 = vmatprep.subr.mxu0 0.0
        %254 = vmatpush1.msra.mxu0 0.0
        %255 = vmatprep.subr.mxu0 0.0
        %256 = vmatpush1.msra.mxu0 0.0
        %257 = vmatprep.subr.mxu0 0.0
        %258 = vmatpush1.msra.mxu0 0.0
        %259 = vmatprep.subr.mxu0 0.0
        %260 = vmatpush1.msra.mxu0 0.0
        %261 = vmatprep.subr.mxu0 0.0
        %262 = vmatpush1.msra.mxu0 0.0
        %263 = vmatprep.subr.mxu0 0.0
        %264 = vmatpush1.msra.mxu0 0.0
        %265 = vmatprep.subr.mxu0 0.0
        %266 = vmatpush1.msra.mxu0 0.0
        %v267 = vand.u32 %v213, 4294901760
        %268 = vmatprep.subr.mxu0 %v267
        %v269 = vand.u32 %v212, 4294901760
        %270 = vmatpush1.msra.mxu0 %v269
        %v271 = vand.u32 %v210, 4294901760
        %272 = vmatprep.subr.mxu0 %v271
        %v273 = vand.u32 %v209, 4294901760
        %274 = vmatpush1.msra.mxu0 %v273
        %v275 = vand.u32 %v207, 4294901760
        %276 = vmatprep.subr.mxu0 %v275
        %v277 = vand.u32 %v206, 4294901760
        %278 = vmatpush1.msra.mxu0 %v277
        %v279 = vand.u32 %v204, 4294901760
        %280 = vmatprep.subr.mxu0 %v279
        %v281 = vand.u32 %v203, 4294901760
        %282 = vmatpush1.msra.mxu0 %v281
        %v283 = vand.u32 %v201, 4294901760
        %284 = vmatprep.subr.mxu0 %v283
        %v285 = vand.u32 %v200, 4294901760
        %286 = vmatpush1.msra.mxu0 %v285
        %v287 = vand.u32 %v198, 4294901760
        %288 = vmatprep.subr.mxu0 %v287
        %v289 = vand.u32 %v197, 4294901760
        %290 = vmatpush1.msra.mxu0 %v289
        %v291 = vand.u32 %v195, 4294901760
        %292 = vmatprep.subr.mxu0 %v291
        %v293 = vand.u32 %v194, 4294901760
        %294 = vmatpush1.msra.mxu0 %v293
        %v295 = vand.u32 %v192, 4294901760
        %296 = vmatprep.subr.mxu0 %v295
        %v297 = vand.u32 %v191, 4294901760
        %298 = vmatpush1.msra.mxu0 %v297
        %299 = vmatprep.subr.mxu0 0.0
        %300 = vmatpush2.msra.mxu0 0.0
        %301 = vmatprep.subr.mxu0 0.0
        %302 = vmatpush2.msra.mxu0 0.0
        %303 = vmatprep.subr.mxu0 0.0
        %304 = vmatpush2.msra.mxu0 0.0
        %305 = vmatprep.subr.mxu0 0.0
        %306 = vmatpush2.msra.mxu0 0.0
        %307 = vmatprep.subr.mxu0 0.0
        %308 = vmatpush2.msra.mxu0 0.0
        %309 = vmatprep.subr.mxu0 0.0
        %310 = vmatpush2.msra.mxu0 0.0
        %311 = vmatprep.subr.mxu0 0.0
        %312 = vmatpush2.msra.mxu0 0.0
        %313 = vmatprep.subr.mxu0 0.0
        %314 = vmatpush2.msra.mxu0 0.0
        %315 = vmatprep.subr.mxu0 0.0
        %316 = vmatpush2.msra.mxu0 0.0
        %317 = vmatprep.subr.mxu0 0.0
        %318 = vmatpush2.msra.mxu0 0.0
        %319 = vmatprep.subr.mxu0 0.0
        %320 = vmatpush2.msra.mxu0 0.0
        %321 = vmatprep.subr.mxu0 0.0
        %322 = vmatpush2.msra.mxu0 0.0
        %323 = vmatprep.subr.mxu0 0.0
        %324 = vmatpush2.msra.mxu0 0.0
        %325 = vmatprep.subr.mxu0 0.0
        %326 = vmatpush2.msra.mxu0 0.0
        %327 = vmatprep.subr.mxu0 0.0
        %328 = vmatpush2.msra.mxu0 0.0
        %329 = vmatprep.subr.mxu0 0.0
        %330 = vmatpush2.msra.mxu0 0.0
        %331 = vmatprep.mubr.f32.mxu0 0.0
        %v332 = vand.u32 %v249, 4294901760
        %v333 = vsub.f32 %v249, %v332
        %v334 = vand.u32 %v333, 4294901760
        %v335 = vsub.f32 %v333, %v334
        %v336 = vand.u32 %v335, 4294901760
        %337 = vmatmul.mubr.f32.gmra.mxu0 %v336
        %v338 = vpop.f32.mrf.mxu0
        %v339 = vadd.f32 0.0, %v338
        %v340 = vpop.f32.mrf.mxu0
        %v341 = vadd.f32 0.0, %v340
        %342 = vdwg.mxu0
        %343 = vmatprep.subr.mxu0 0.0
        %344 = vmatpush1.msra.mxu0 0.0
        %345 = vmatprep.subr.mxu0 0.0
        %346 = vmatpush1.msra.mxu0 0.0
        %347 = vmatprep.subr.mxu0 0.0
        %348 = vmatpush1.msra.mxu0 0.0
        %349 = vmatprep.subr.mxu0 0.0
        %350 = vmatpush1.msra.mxu0 0.0
        %351 = vmatprep.subr.mxu0 0.0
        %352 = vmatpush1.msra.mxu0 0.0
        %353 = vmatprep.subr.mxu0 0.0
        %354 = vmatpush1.msra.mxu0 0.0
        %355 = vmatprep.subr.mxu0 0.0
        %356 = vmatpush1.msra.mxu0 0.0
        %357 = vmatprep.subr.mxu0 0.0
        %358 = vmatpush1.msra.mxu0 0.0
        %v359 = vand.u32 %v213, 4294901760
        %v360 = vsub.f32 %v213, %v359
        %v361 = vand.u32 %v360, 4294901760
        %v362 = vsub.f32 %v360, %v361
        %v363 = vand.u32 %v362, 4294901760
        %364 = vmatprep.subr.mxu0 %v363
        %v365 = vand.u32 %v212, 4294901760
        %v366 = vsub.f32 %v212, %v365
        %v367 = vand.u32 %v366, 4294901760
        %v368 = vsub.f32 %v366, %v367
        %v369 = vand.u32 %v368, 4294901760
        %370 = vmatpush1.msra.mxu0 %v369
        %v371 = vand.u32 %v210, 4294901760
        %v372 = vsub.f32 %v210, %v371
        %v373 = vand.u32 %v372, 4294901760
        %v374 = vsub.f32 %v372, %v373
        %v375 = vand.u32 %v374, 4294901760
        %376 = vmatprep.subr.mxu0 %v375
        %v377 = vand.u32 %v209, 4294901760
        %v378 = vsub.f32 %v209, %v377
        %v379 = vand.u32 %v378, 4294901760
        %v380 = vsub.f32 %v378, %v379
        %v381 = vand.u32 %v380, 4294901760
        %382 = vmatpush1.msra.mxu0 %v381
        %v383 = vand.u32 %v207, 4294901760
        %v384 = vsub.f32 %v207, %v383
        %v385 = vand.u32 %v384, 4294901760
        %v386 = vsub.f32 %v384, %v385
        %v387 = vand.u32 %v386, 4294901760
        %388 = vmatprep.subr.mxu0 %v387
        %v389 = vand.u32 %v206, 4294901760
        %v390 = vsub.f32 %v206, %v389
        %v391 = vand.u32 %v390, 4294901760
        %v392 = vsub.f32 %v390, %v391
        %v393 = vand.u32 %v392, 4294901760
        %394 = vmatpush1.msra.mxu0 %v393
        %v395 = vand.u32 %v204, 4294901760
        %v396 = vsub.f32 %v204, %v395
        %v397 = vand.u32 %v396, 4294901760
        %v398 = vsub.f32 %v396, %v397
        %v399 = vand.u32 %v398, 4294901760
        %400 = vmatprep.subr.mxu0 %v399
        %v401 = vand.u32 %v203, 4294901760
        %v402 = vsub.f32 %v203, %v401
        %v403 = vand.u32 %v402, 4294901760
        %v404 = vsub.f32 %v402, %v403
        %v405 = vand.u32 %v404, 4294901760
        %406 = vmatpush1.msra.mxu0 %v405
        %v407 = vand.u32 %v201, 4294901760
        %v408 = vsub.f32 %v201, %v407
        %v409 = vand.u32 %v408, 4294901760
        %v410 = vsub.f32 %v408, %v409
        %v411 = vand.u32 %v410, 4294901760
        %412 = vmatprep.subr.mxu0 %v411
        %v413 = vand.u32 %v200, 4294901760
        %v414 = vsub.f32 %v200, %v413
        %v415 = vand.u32 %v414, 4294901760
        %v416 = vsub.f32 %v414, %v415
        %v417 = vand.u32 %v416, 4294901760
        %418 = vmatpush1.msra.mxu0 %v417
        %v419 = vand.u32 %v198, 4294901760
        %v420 = vsub.f32 %v198, %v419
        %v421 = vand.u32 %v420, 4294901760
        %v422 = vsub.f32 %v420, %v421
        %v423 = vand.u32 %v422, 4294901760
        %424 = vmatprep.subr.mxu0 %v423
        %v425 = vand.u32 %v197, 4294901760
        %v426 = vsub.f32 %v197, %v425
        %v427 = vand.u32 %v426, 4294901760
        %v428 = vsub.f32 %v426, %v427
        %v429 = vand.u32 %v428, 4294901760
        %430 = vmatpush1.msra.mxu0 %v429
        %v431 = vand.u32 %v195, 4294901760
        %v432 = vsub.f32 %v195, %v431
        %v433 = vand.u32 %v432, 4294901760
        %v434 = vsub.f32 %v432, %v433
        %v435 = vand.u32 %v434, 4294901760
        %436 = vmatprep.subr.mxu0 %v435
        %v437 = vand.u32 %v194, 4294901760
        %v438 = vsub.f32 %v194, %v437
        %v439 = vand.u32 %v438, 4294901760
        %v440 = vsub.f32 %v438, %v439
        %v441 = vand.u32 %v440, 4294901760
        %442 = vmatpush1.msra.mxu0 %v441
        %v443 = vand.u32 %v192, 4294901760
        %v444 = vsub.f32 %v192, %v443
        %v445 = vand.u32 %v444, 4294901760
        %v446 = vsub.f32 %v444, %v445
        %v447 = vand.u32 %v446, 4294901760
        %448 = vmatprep.subr.mxu0 %v447
        %v449 = vand.u32 %v191, 4294901760
        %v450 = vsub.f32 %v191, %v449
        %v451 = vand.u32 %v450, 4294901760
        %v452 = vsub.f32 %v450, %v451
        %v453 = vand.u32 %v452, 4294901760
        %454 = vmatpush1.msra.mxu0 %v453
        %455 = vmatprep.subr.mxu0 0.0
        %456 = vmatpush2.msra.mxu0 0.0
        %457 = vmatprep.subr.mxu0 0.0
        %458 = vmatpush2.msra.mxu0 0.0
        %459 = vmatprep.subr.mxu0 0.0
        %460 = vmatpush2.msra.mxu0 0.0
        %461 = vmatprep.subr.mxu0 0.0
        %462 = vmatpush2.msra.mxu0 0.0
        %463 = vmatprep.subr.mxu0 0.0
        %464 = vmatpush2.msra.mxu0 0.0
        %465 = vmatprep.subr.mxu0 0.0
        %466 = vmatpush2.msra.mxu0 0.0
        %467 = vmatprep.subr.mxu0 0.0
        %468 = vmatpush2.msra.mxu0 0.0
        %469 = vmatprep.subr.mxu0 0.0
        %470 = vmatpush2.msra.mxu0 0.0
        %471 = vmatprep.subr.mxu0 0.0
        %472 = vmatpush2.msra.mxu0 0.0
        %473 = vmatprep.subr.mxu0 0.0
        %474 = vmatpush2.msra.mxu0 0.0
        %475 = vmatprep.subr.mxu0 0.0
        %476 = vmatpush2.msra.mxu0 0.0
        %477 = vmatprep.subr.mxu0 0.0
        %478 = vmatpush2.msra.mxu0 0.0
        %479 = vmatprep.subr.mxu0 0.0
        %480 = vmatpush2.msra.mxu0 0.0
        %481 = vmatprep.subr.mxu0 0.0
        %482 = vmatpush2.msra.mxu0 0.0
        %483 = vmatprep.subr.mxu0 0.0
        %484 = vmatpush2.msra.mxu0 0.0
        %485 = vmatprep.subr.mxu0 0.0
        %486 = vmatpush2.msra.mxu0 0.0
        %487 = vmatprep.mubr.f32.mxu0 0.0
        %v488 = vand.u32 %v249, 4294901760
        %489 = vmatmul.mubr.f32.gmra.mxu0 %v488
        %v490 = vpop.f32.mrf.mxu0
        %v491 = vadd.f32 %v339, %v490
        %v492 = vpop.f32.mrf.mxu0
        %v493 = vadd.f32 %v341, %v492
        %494 = vdwg.mxu0
        %495 = vmatprep.subr.mxu0 0.0
        %496 = vmatpush1.msra.mxu0 0.0
        %497 = vmatprep.subr.mxu0 0.0
        %498 = vmatpush1.msra.mxu0 0.0
        %499 = vmatprep.subr.mxu0 0.0
        %500 = vmatpush1.msra.mxu0 0.0
        %501 = vmatprep.subr.mxu0 0.0
        %502 = vmatpush1.msra.mxu0 0.0
        %503 = vmatprep.subr.mxu0 0.0
        %504 = vmatpush1.msra.mxu0 0.0
        %505 = vmatprep.subr.mxu0 0.0
        %506 = vmatpush1.msra.mxu0 0.0
        %507 = vmatprep.subr.mxu0 0.0
        %508 = vmatpush1.msra.mxu0 0.0
        %509 = vmatprep.subr.mxu0 0.0
        %510 = vmatpush1.msra.mxu0 0.0
        %v511 = vand.u32 %v213, 4294901760
        %v512 = vsub.f32 %v213, %v511
        %513 = vmatprep.subr.mxu0 %v512
        %v514 = vand.u32 %v212, 4294901760
        %v515 = vsub.f32 %v212, %v514
        %516 = vmatpush1.msra.mxu0 %v515
        %v517 = vand.u32 %v210, 4294901760
        %v518 = vsub.f32 %v210, %v517
        %519 = vmatprep.subr.mxu0 %v518
        %v520 = vand.u32 %v209, 4294901760
        %v521 = vsub.f32 %v209, %v520
        %522 = vmatpush1.msra.mxu0 %v521
        %v523 = vand.u32 %v207, 4294901760
        %v524 = vsub.f32 %v207, %v523
        %525 = vmatprep.subr.mxu0 %v524
        %v526 = vand.u32 %v206, 4294901760
        %v527 = vsub.f32 %v206, %v526
        %528 = vmatpush1.msra.mxu0 %v527
        %v529 = vand.u32 %v204, 4294901760
        %v530 = vsub.f32 %v204, %v529
        %531 = vmatprep.subr.mxu0 %v530
        %v532 = vand.u32 %v203, 4294901760
        %v533 = vsub.f32 %v203, %v532
        %534 = vmatpush1.msra.mxu0 %v533
        %v535 = vand.u32 %v201, 4294901760
        %v536 = vsub.f32 %v201, %v535
        %537 = vmatprep.subr.mxu0 %v536
        %v538 = vand.u32 %v200, 4294901760
        %v539 = vsub.f32 %v200, %v538
        %540 = vmatpush1.msra.mxu0 %v539
        %v541 = vand.u32 %v198, 4294901760
        %v542 = vsub.f32 %v198, %v541
        %543 = vmatprep.subr.mxu0 %v542
        %v544 = vand.u32 %v197, 4294901760
        %v545 = vsub.f32 %v197, %v544
        %546 = vmatpush1.msra.mxu0 %v545
        %v547 = vand.u32 %v195, 4294901760
        %v548 = vsub.f32 %v195, %v547
        %549 = vmatprep.subr.mxu0 %v548
        %v550 = vand.u32 %v194, 4294901760
        %v551 = vsub.f32 %v194, %v550
        %552 = vmatpush1.msra.mxu0 %v551
        %v553 = vand.u32 %v192, 4294901760
        %v554 = vsub.f32 %v192, %v553
        %555 = vmatprep.subr.mxu0 %v554
        %v556 = vand.u32 %v191, 4294901760
        %v557 = vsub.f32 %v191, %v556
        %558 = vmatpush1.msra.mxu0 %v557
        %559 = vmatprep.subr.mxu0 0.0
        %560 = vmatpush2.msra.mxu0 0.0
        %561 = vmatprep.subr.mxu0 0.0
        %562 = vmatpush2.msra.mxu0 0.0
        %563 = vmatprep.subr.mxu0 0.0
        %564 = vmatpush2.msra.mxu0 0.0
        %565 = vmatprep.subr.mxu0 0.0
        %566 = vmatpush2.msra.mxu0 0.0
        %567 = vmatprep.subr.mxu0 0.0
        %568 = vmatpush2.msra.mxu0 0.0
        %569 = vmatprep.subr.mxu0 0.0
        %570 = vmatpush2.msra.mxu0 0.0
        %571 = vmatprep.subr.mxu0 0.0
        %572 = vmatpush2.msra.mxu0 0.0
        %573 = vmatprep.subr.mxu0 0.0
        %574 = vmatpush2.msra.mxu0 0.0
        %575 = vmatprep.subr.mxu0 0.0
        %576 = vmatpush2.msra.mxu0 0.0
        %577 = vmatprep.subr.mxu0 0.0
        %578 = vmatpush2.msra.mxu0 0.0
        %579 = vmatprep.subr.mxu0 0.0
        %580 = vmatpush2.msra.mxu0 0.0
        %581 = vmatprep.subr.mxu0 0.0
        %582 = vmatpush2.msra.mxu0 0.0
        %583 = vmatprep.subr.mxu0 0.0
        %584 = vmatpush2.msra.mxu0 0.0
        %585 = vmatprep.subr.mxu0 0.0
        %586 = vmatpush2.msra.mxu0 0.0
        %587 = vmatprep.subr.mxu0 0.0
        %588 = vmatpush2.msra.mxu0 0.0
        %589 = vmatprep.subr.mxu0 0.0
        %590 = vmatpush2.msra.mxu0 0.0
        %591 = vmatprep.mubr.f32.mxu0 0.0
        %v592 = vand.u32 %v249, 4294901760
        %v593 = vsub.f32 %v249, %v592
        %594 = vmatmul.mubr.f32.gmra.mxu0 %v593
        %v595 = vpop.f32.mrf.mxu0
        %v596 = vadd.f32 %v491, %v595
        %v597 = vpop.f32.mrf.mxu0
        %v598 = vadd.f32 %v493, %v597
        %599 = vdwg.mxu0
        %600 = vmatprep.subr.mxu0 0.0
        %601 = vmatpush1.msra.mxu0 0.0
        %602 = vmatprep.subr.mxu0 0.0
        %603 = vmatpush1.msra.mxu0 0.0
        %604 = vmatprep.subr.mxu0 0.0
        %605 = vmatpush1.msra.mxu0 0.0
        %606 = vmatprep.subr.mxu0 0.0
        %607 = vmatpush1.msra.mxu0 0.0
        %608 = vmatprep.subr.mxu0 0.0
        %609 = vmatpush1.msra.mxu0 0.0
        %610 = vmatprep.subr.mxu0 0.0
        %611 = vmatpush1.msra.mxu0 0.0
        %612 = vmatprep.subr.mxu0 0.0
        %613 = vmatpush1.msra.mxu0 0.0
        %614 = vmatprep.subr.mxu0 0.0
        %615 = vmatpush1.msra.mxu0 0.0
        %v616 = vand.u32 %v213, 4294901760
        %617 = vmatprep.subr.mxu0 %v616
        %v618 = vand.u32 %v212, 4294901760
        %619 = vmatpush1.msra.mxu0 %v618
        %v620 = vand.u32 %v210, 4294901760
        %621 = vmatprep.subr.mxu0 %v620
        %v622 = vand.u32 %v209, 4294901760
        %623 = vmatpush1.msra.mxu0 %v622
        %v624 = vand.u32 %v207, 4294901760
        %625 = vmatprep.subr.mxu0 %v624
        %v626 = vand.u32 %v206, 4294901760
        %627 = vmatpush1.msra.mxu0 %v626
        %v628 = vand.u32 %v204, 4294901760
        %629 = vmatprep.subr.mxu0 %v628
        %v630 = vand.u32 %v203, 4294901760
        %631 = vmatpush1.msra.mxu0 %v630
        %v632 = vand.u32 %v201, 4294901760
        %633 = vmatprep.subr.mxu0 %v632
        %v634 = vand.u32 %v200, 4294901760
        %635 = vmatpush1.msra.mxu0 %v634
        %v636 = vand.u32 %v198, 4294901760
        %637 = vmatprep.subr.mxu0 %v636
        %v638 = vand.u32 %v197, 4294901760
        %639 = vmatpush1.msra.mxu0 %v638
        %v640 = vand.u32 %v195, 4294901760
        %641 = vmatprep.subr.mxu0 %v640
        %v642 = vand.u32 %v194, 4294901760
        %643 = vmatpush1.msra.mxu0 %v642
        %v644 = vand.u32 %v192, 4294901760
        %645 = vmatprep.subr.mxu0 %v644
        %v646 = vand.u32 %v191, 4294901760
        %647 = vmatpush1.msra.mxu0 %v646
        %648 = vmatprep.subr.mxu0 0.0
        %649 = vmatpush2.msra.mxu0 0.0
        %650 = vmatprep.subr.mxu0 0.0
        %651 = vmatpush2.msra.mxu0 0.0
        %652 = vmatprep.subr.mxu0 0.0
        %653 = vmatpush2.msra.mxu0 0.0
        %654 = vmatprep.subr.mxu0 0.0
        %655 = vmatpush2.msra.mxu0 0.0
        %656 = vmatprep.subr.mxu0 0.0
        %657 = vmatpush2.msra.mxu0 0.0
        %658 = vmatprep.subr.mxu0 0.0
        %659 = vmatpush2.msra.mxu0 0.0
        %660 = vmatprep.subr.mxu0 0.0
        %661 = vmatpush2.msra.mxu0 0.0
        %662 = vmatprep.subr.mxu0 0.0
        %663 = vmatpush2.msra.mxu0 0.0
        %664 = vmatprep.subr.mxu0 0.0
        %665 = vmatpush2.msra.mxu0 0.0
        %666 = vmatprep.subr.mxu0 0.0
        %667 = vmatpush2.msra.mxu0 0.0
        %668 = vmatprep.subr.mxu0 0.0
        %669 = vmatpush2.msra.mxu0 0.0
        %670 = vmatprep.subr.mxu0 0.0
        %671 = vmatpush2.msra.mxu0 0.0
        %672 = vmatprep.subr.mxu0 0.0
        %673 = vmatpush2.msra.mxu0 0.0
        %674 = vmatprep.subr.mxu0 0.0
        %675 = vmatpush2.msra.mxu0 0.0
        %676 = vmatprep.subr.mxu0 0.0
        %677 = vmatpush2.msra.mxu0 0.0
        %678 = vmatprep.subr.mxu0 0.0
        %679 = vmatpush2.msra.mxu0 0.0
        %680 = vmatprep.mubr.f32.mxu0 0.0
        %v681 = vand.u32 %v249, 4294901760
        %v682 = vsub.f32 %v249, %v681
        %v683 = vand.u32 %v682, 4294901760
        %684 = vmatmul.mubr.f32.gmra.mxu0 %v683
        %v685 = vpop.f32.mrf.mxu0
        %v686 = vadd.f32 %v596, %v685
        %v687 = vpop.f32.mrf.mxu0
        %v688 = vadd.f32 %v598, %v687
        %689 = vdwg.mxu0
        %690 = vmatprep.subr.mxu0 0.0
        %691 = vmatpush1.msra.mxu0 0.0
        %692 = vmatprep.subr.mxu0 0.0
        %693 = vmatpush1.msra.mxu0 0.0
        %694 = vmatprep.subr.mxu0 0.0
        %695 = vmatpush1.msra.mxu0 0.0
        %696 = vmatprep.subr.mxu0 0.0
        %697 = vmatpush1.msra.mxu0 0.0
        %698 = vmatprep.subr.mxu0 0.0
        %699 = vmatpush1.msra.mxu0 0.0
        %700 = vmatprep.subr.mxu0 0.0
        %701 = vmatpush1.msra.mxu0 0.0
        %702 = vmatprep.subr.mxu0 0.0
        %703 = vmatpush1.msra.mxu0 0.0
        %704 = vmatprep.subr.mxu0 0.0
        %705 = vmatpush1.msra.mxu0 0.0
        %v706 = vand.u32 %v213, 4294901760
        %v707 = vsub.f32 %v213, %v706
        %v708 = vand.u32 %v707, 4294901760
        %709 = vmatprep.subr.mxu0 %v708
        %v710 = vand.u32 %v212, 4294901760
        %v711 = vsub.f32 %v212, %v710
        %v712 = vand.u32 %v711, 4294901760
        %713 = vmatpush1.msra.mxu0 %v712
        %v714 = vand.u32 %v210, 4294901760
        %v715 = vsub.f32 %v210, %v714
        %v716 = vand.u32 %v715, 4294901760
        %717 = vmatprep.subr.mxu0 %v716
        %v718 = vand.u32 %v209, 4294901760
        %v719 = vsub.f32 %v209, %v718
        %v720 = vand.u32 %v719, 4294901760
        %721 = vmatpush1.msra.mxu0 %v720
        %v722 = vand.u32 %v207, 4294901760
        %v723 = vsub.f32 %v207, %v722
        %v724 = vand.u32 %v723, 4294901760
        %725 = vmatprep.subr.mxu0 %v724
        %v726 = vand.u32 %v206, 4294901760
        %v727 = vsub.f32 %v206, %v726
        %v728 = vand.u32 %v727, 4294901760
        %729 = vmatpush1.msra.mxu0 %v728
        %v730 = vand.u32 %v204, 4294901760
        %v731 = vsub.f32 %v204, %v730
        %v732 = vand.u32 %v731, 4294901760
        %733 = vmatprep.subr.mxu0 %v732
        %v734 = vand.u32 %v203, 4294901760
        %v735 = vsub.f32 %v203, %v734
        %v736 = vand.u32 %v735, 4294901760
        %737 = vmatpush1.msra.mxu0 %v736
        %v738 = vand.u32 %v201, 4294901760
        %v739 = vsub.f32 %v201, %v738
        %v740 = vand.u32 %v739, 4294901760
        %741 = vmatprep.subr.mxu0 %v740
        %v742 = vand.u32 %v200, 4294901760
        %v743 = vsub.f32 %v200, %v742
        %v744 = vand.u32 %v743, 4294901760
        %745 = vmatpush1.msra.mxu0 %v744
        %v746 = vand.u32 %v198, 4294901760
        %v747 = vsub.f32 %v198, %v746
        %v748 = vand.u32 %v747, 4294901760
        %749 = vmatprep.subr.mxu0 %v748
        %v750 = vand.u32 %v197, 4294901760
        %v751 = vsub.f32 %v197, %v750
        %v752 = vand.u32 %v751, 4294901760
        %753 = vmatpush1.msra.mxu0 %v752
        %v754 = vand.u32 %v195, 4294901760
        %v755 = vsub.f32 %v195, %v754
        %v756 = vand.u32 %v755, 4294901760
        %757 = vmatprep.subr.mxu0 %v756
        %v758 = vand.u32 %v194, 4294901760
        %v759 = vsub.f32 %v194, %v758
        %v760 = vand.u32 %v759, 4294901760
        %761 = vmatpush1.msra.mxu0 %v760
        %v762 = vand.u32 %v192, 4294901760
        %v763 = vsub.f32 %v192, %v762
        %v764 = vand.u32 %v763, 4294901760
        %765 = vmatprep.subr.mxu0 %v764
        %v766 = vand.u32 %v191, 4294901760
        %v767 = vsub.f32 %v191, %v766
        %v768 = vand.u32 %v767, 4294901760
        %769 = vmatpush1.msra.mxu0 %v768
        %770 = vmatprep.subr.mxu0 0.0
        %771 = vmatpush2.msra.mxu0 0.0
        %772 = vmatprep.subr.mxu0 0.0
        %773 = vmatpush2.msra.mxu0 0.0
        %774 = vmatprep.subr.mxu0 0.0
        %775 = vmatpush2.msra.mxu0 0.0
        %776 = vmatprep.subr.mxu0 0.0
        %777 = vmatpush2.msra.mxu0 0.0
        %778 = vmatprep.subr.mxu0 0.0
        %779 = vmatpush2.msra.mxu0 0.0
        %780 = vmatprep.subr.mxu0 0.0
        %781 = vmatpush2.msra.mxu0 0.0
        %782 = vmatprep.subr.mxu0 0.0
        %783 = vmatpush2.msra.mxu0 0.0
        %784 = vmatprep.subr.mxu0 0.0
        %785 = vmatpush2.msra.mxu0 0.0
        %786 = vmatprep.subr.mxu0 0.0
        %787 = vmatpush2.msra.mxu0 0.0
        %788 = vmatprep.subr.mxu0 0.0
        %789 = vmatpush2.msra.mxu0 0.0
        %790 = vmatprep.subr.mxu0 0.0
        %791 = vmatpush2.msra.mxu0 0.0
        %792 = vmatprep.subr.mxu0 0.0
        %793 = vmatpush2.msra.mxu0 0.0
        %794 = vmatprep.subr.mxu0 0.0
        %795 = vmatpush2.msra.mxu0 0.0
        %796 = vmatprep.subr.mxu0 0.0
        %797 = vmatpush2.msra.mxu0 0.0
        %798 = vmatprep.subr.mxu0 0.0
        %799 = vmatpush2.msra.mxu0 0.0
        %800 = vmatprep.subr.mxu0 0.0
        %801 = vmatpush2.msra.mxu0 0.0
        %802 = vmatprep.mubr.f32.mxu0 0.0
        %v803 = vand.u32 %v249, 4294901760
        %804 = vmatmul.mubr.f32.gmra.mxu0 %v803
        %v805 = vpop.f32.mrf.mxu0
        %v806 = vadd.f32 %v686, %v805
        %v807 = vpop.f32.mrf.mxu0
        %v808 = vadd.f32 %v688, %v807
        %809 = vdwg.mxu0
        %810 = vmatprep.subr.mxu0 0.0
        %811 = vmatpush1.msra.mxu0 0.0
        %812 = vmatprep.subr.mxu0 0.0
        %813 = vmatpush1.msra.mxu0 0.0
        %814 = vmatprep.subr.mxu0 0.0
        %815 = vmatpush1.msra.mxu0 0.0
        %816 = vmatprep.subr.mxu0 0.0
        %817 = vmatpush1.msra.mxu0 0.0
        %818 = vmatprep.subr.mxu0 0.0
        %819 = vmatpush1.msra.mxu0 0.0
        %820 = vmatprep.subr.mxu0 0.0
        %821 = vmatpush1.msra.mxu0 0.0
        %822 = vmatprep.subr.mxu0 0.0
        %823 = vmatpush1.msra.mxu0 0.0
        %824 = vmatprep.subr.mxu0 0.0
        %825 = vmatpush1.msra.mxu0 0.0
        %v826 = vand.u32 %v213, 4294901760
        %827 = vmatprep.subr.mxu0 %v826
        %v828 = vand.u32 %v212, 4294901760
        %829 = vmatpush1.msra.mxu0 %v828
        %v830 = vand.u32 %v210, 4294901760
        %831 = vmatprep.subr.mxu0 %v830
        %v832 = vand.u32 %v209, 4294901760
        %833 = vmatpush1.msra.mxu0 %v832
        %v834 = vand.u32 %v207, 4294901760
        %835 = vmatprep.subr.mxu0 %v834
        %v836 = vand.u32 %v206, 4294901760
        %837 = vmatpush1.msra.mxu0 %v836
        %v838 = vand.u32 %v204, 4294901760
        %839 = vmatprep.subr.mxu0 %v838
        %v840 = vand.u32 %v203, 4294901760
        %841 = vmatpush1.msra.mxu0 %v840
        %v842 = vand.u32 %v201, 4294901760
        %843 = vmatprep.subr.mxu0 %v842
        %v844 = vand.u32 %v200, 4294901760
        %845 = vmatpush1.msra.mxu0 %v844
        %v846 = vand.u32 %v198, 4294901760
        %847 = vmatprep.subr.mxu0 %v846
        %v848 = vand.u32 %v197, 4294901760
        %849 = vmatpush1.msra.mxu0 %v848
        %v850 = vand.u32 %v195, 4294901760
        %851 = vmatprep.subr.mxu0 %v850
        %v852 = vand.u32 %v194, 4294901760
        %853 = vmatpush1.msra.mxu0 %v852
        %v854 = vand.u32 %v192, 4294901760
        %855 = vmatprep.subr.mxu0 %v854
        %v856 = vand.u32 %v191, 4294901760
        %857 = vmatpush1.msra.mxu0 %v856
        %858 = vmatprep.subr.mxu0 0.0
        %859 = vmatpush2.msra.mxu0 0.0
        %860 = vmatprep.subr.mxu0 0.0
        %861 = vmatpush2.msra.mxu0 0.0
        %862 = vmatprep.subr.mxu0 0.0
        %863 = vmatpush2.msra.mxu0 0.0
        %864 = vmatprep.subr.mxu0 0.0
        %865 = vmatpush2.msra.mxu0 0.0
        %866 = vmatprep.subr.mxu0 0.0
        %867 = vmatpush2.msra.mxu0 0.0
        %868 = vmatprep.subr.mxu0 0.0
        %869 = vmatpush2.msra.mxu0 0.0
        %870 = vmatprep.subr.mxu0 0.0
        %871 = vmatpush2.msra.mxu0 0.0
        %872 = vmatprep.subr.mxu0 0.0
        %873 = vmatpush2.msra.mxu0 0.0
        %874 = vmatprep.subr.mxu0 0.0
        %875 = vmatpush2.msra.mxu0 0.0
        %876 = vmatprep.subr.mxu0 0.0
        %877 = vmatpush2.msra.mxu0 0.0
        %878 = vmatprep.subr.mxu0 0.0
        %879 = vmatpush2.msra.mxu0 0.0
        %880 = vmatprep.subr.mxu0 0.0
        %881 = vmatpush2.msra.mxu0 0.0
        %882 = vmatprep.subr.mxu0 0.0
        %883 = vmatpush2.msra.mxu0 0.0
        %884 = vmatprep.subr.mxu0 0.0
        %885 = vmatpush2.msra.mxu0 0.0
        %886 = vmatprep.subr.mxu0 0.0
        %887 = vmatpush2.msra.mxu0 0.0
        %888 = vmatprep.subr.mxu0 0.0
        %889 = vmatpush2.msra.mxu0 0.0
        %890 = vmatprep.mubr.f32.mxu0 0.0
        %v891 = vand.u32 %v249, 4294901760
        %892 = vmatmul.mubr.f32.gmra.mxu0 %v891
        %v893 = vpop.f32.mrf.mxu0
        %v894 = vadd.f32 %v806, %v893
        %v895 = vpop.f32.mrf.mxu0
        %v896 = vadd.f32 %v808, %v895
        %897 = vdwg.mxu0
        %898 = vmatprep.subr.mxu0 0.0
        %899 = vmatpush1.msra.mxu0 0.0
        %900 = vmatprep.subr.mxu0 0.0
        %901 = vmatpush1.msra.mxu0 0.0
        %902 = vmatprep.subr.mxu0 0.0
        %903 = vmatpush1.msra.mxu0 0.0
        %904 = vmatprep.subr.mxu0 0.0
        %905 = vmatpush1.msra.mxu0 0.0
        %906 = vmatprep.subr.mxu0 0.0
        %907 = vmatpush1.msra.mxu0 0.0
        %908 = vmatprep.subr.mxu0 0.0
        %909 = vmatpush1.msra.mxu0 0.0
        %910 = vmatprep.subr.mxu0 0.0
        %911 = vmatpush1.msra.mxu0 0.0
        %912 = vmatprep.subr.mxu0 0.0
        %913 = vmatpush1.msra.mxu0 0.0
        %914 = vmatprep.subr.mxu0 0.0
        %v915 = vand.u32 %v214, 4294901760
        %916 = vmatpush1.msra.mxu0 %v915
        %917 = vmatprep.subr.mxu0 0.0
        %v918 = vand.u32 %v211, 4294901760
        %919 = vmatpush1.msra.mxu0 %v918
        %920 = vmatprep.subr.mxu0 0.0
        %v921 = vand.u32 %v208, 4294901760
        %922 = vmatpush1.msra.mxu0 %v921
        %923 = vmatprep.subr.mxu0 0.0
        %v924 = vand.u32 %v205, 4294901760
        %925 = vmatpush1.msra.mxu0 %v924
        %926 = vmatprep.subr.mxu0 0.0
        %v927 = vand.u32 %v202, 4294901760
        %928 = vmatpush1.msra.mxu0 %v927
        %929 = vmatprep.subr.mxu0 0.0
        %v930 = vand.u32 %v199, 4294901760
        %931 = vmatpush1.msra.mxu0 %v930
        %932 = vmatprep.subr.mxu0 0.0
        %v933 = vand.u32 %v196, 4294901760
        %934 = vmatpush1.msra.mxu0 %v933
        %935 = vmatprep.subr.mxu0 0.0
        %v936 = vand.u32 %v193, 4294901760
        %937 = vmatpush1.msra.mxu0 %v936
        %938 = vmatprep.subr.mxu0 0.0
        %939 = vmatpush2.msra.mxu0 0.0
        %940 = vmatprep.subr.mxu0 0.0
        %941 = vmatpush2.msra.mxu0 0.0
        %942 = vmatprep.subr.mxu0 0.0
        %943 = vmatpush2.msra.mxu0 0.0
        %944 = vmatprep.subr.mxu0 0.0
        %945 = vmatpush2.msra.mxu0 0.0
        %946 = vmatprep.subr.mxu0 0.0
        %947 = vmatpush2.msra.mxu0 0.0
        %948 = vmatprep.subr.mxu0 0.0
        %949 = vmatpush2.msra.mxu0 0.0
        %950 = vmatprep.subr.mxu0 0.0
        %951 = vmatpush2.msra.mxu0 0.0
        %952 = vmatprep.subr.mxu0 0.0
        %953 = vmatpush2.msra.mxu0 0.0
        %954 = vmatprep.subr.mxu0 0.0
        %955 = vmatpush2.msra.mxu0 0.0
        %956 = vmatprep.subr.mxu0 0.0
        %957 = vmatpush2.msra.mxu0 0.0
        %958 = vmatprep.subr.mxu0 0.0
        %959 = vmatpush2.msra.mxu0 0.0
        %960 = vmatprep.subr.mxu0 0.0
        %961 = vmatpush2.msra.mxu0 0.0
        %962 = vmatprep.subr.mxu0 0.0
        %963 = vmatpush2.msra.mxu0 0.0
        %964 = vmatprep.subr.mxu0 0.0
        %965 = vmatpush2.msra.mxu0 0.0
        %966 = vmatprep.subr.mxu0 0.0
        %967 = vmatpush2.msra.mxu0 0.0
        %968 = vmatprep.subr.mxu0 0.0
        %969 = vmatpush2.msra.mxu0 0.0
        %970 = vmatprep.mubr.f32.mxu0 0.0
        %v971 = vand.u32 %v249, 4294901760
        %v972 = vsub.f32 %v249, %v971
        %v973 = vand.u32 %v972, 4294901760
        %v974 = vsub.f32 %v972, %v973
        %v975 = vand.u32 %v974, 4294901760
        %976 = vmatmul.mubr.f32.gmra.mxu0 %v975
        %v977 = vpop.f32.mrf.mxu0
        %v978 = vadd.f32 0.0, %v977
        %v979 = vpop.f32.mrf.mxu0
        %980 = vdwg.mxu0
        %981 = vmatprep.subr.mxu0 0.0
        %982 = vmatpush1.msra.mxu0 0.0
        %983 = vmatprep.subr.mxu0 0.0
        %984 = vmatpush1.msra.mxu0 0.0
        %985 = vmatprep.subr.mxu0 0.0
        %986 = vmatpush1.msra.mxu0 0.0
        %987 = vmatprep.subr.mxu0 0.0
        %988 = vmatpush1.msra.mxu0 0.0
        %989 = vmatprep.subr.mxu0 0.0
        %990 = vmatpush1.msra.mxu0 0.0
        %991 = vmatprep.subr.mxu0 0.0
        %992 = vmatpush1.msra.mxu0 0.0
        %993 = vmatprep.subr.mxu0 0.0
        %994 = vmatpush1.msra.mxu0 0.0
        %995 = vmatprep.subr.mxu0 0.0
        %996 = vmatpush1.msra.mxu0 0.0
        %997 = vmatprep.subr.mxu0 0.0
        %v998 = vand.u32 %v214, 4294901760
        %v999 = vsub.f32 %v214, %v998
        %v1000 = vand.u32 %v999, 4294901760
        %v1001 = vsub.f32 %v999, %v1000
        %v1002 = vand.u32 %v1001, 4294901760
        %1003 = vmatpush1.msra.mxu0 %v1002
        %1004 = vmatprep.subr.mxu0 0.0
        %v1005 = vand.u32 %v211, 4294901760
        %v1006 = vsub.f32 %v211, %v1005
        %v1007 = vand.u32 %v1006, 4294901760
        %v1008 = vsub.f32 %v1006, %v1007
        %v1009 = vand.u32 %v1008, 4294901760
        %1010 = vmatpush1.msra.mxu0 %v1009
        %1011 = vmatprep.subr.mxu0 0.0
        %v1012 = vand.u32 %v208, 4294901760
        %v1013 = vsub.f32 %v208, %v1012
        %v1014 = vand.u32 %v1013, 4294901760
        %v1015 = vsub.f32 %v1013, %v1014
        %v1016 = vand.u32 %v1015, 4294901760
        %1017 = vmatpush1.msra.mxu0 %v1016
        %1018 = vmatprep.subr.mxu0 0.0
        %v1019 = vand.u32 %v205, 4294901760
        %v1020 = vsub.f32 %v205, %v1019
        %v1021 = vand.u32 %v1020, 4294901760
        %v1022 = vsub.f32 %v1020, %v1021
        %v1023 = vand.u32 %v1022, 4294901760
        %1024 = vmatpush1.msra.mxu0 %v1023
        %1025 = vmatprep.subr.mxu0 0.0
        %v1026 = vand.u32 %v202, 4294901760
        %v1027 = vsub.f32 %v202, %v1026
        %v1028 = vand.u32 %v1027, 4294901760
        %v1029 = vsub.f32 %v1027, %v1028
        %v1030 = vand.u32 %v1029, 4294901760
        %1031 = vmatpush1.msra.mxu0 %v1030
        %1032 = vmatprep.subr.mxu0 0.0
        %v1033 = vand.u32 %v199, 4294901760
        %v1034 = vsub.f32 %v199, %v1033
        %v1035 = vand.u32 %v1034, 4294901760
        %v1036 = vsub.f32 %v1034, %v1035
        %v1037 = vand.u32 %v1036, 4294901760
        %1038 = vmatpush1.msra.mxu0 %v1037
        %1039 = vmatprep.subr.mxu0 0.0
        %v1040 = vand.u32 %v196, 4294901760
        %v1041 = vsub.f32 %v196, %v1040
        %v1042 = vand.u32 %v1041, 4294901760
        %v1043 = vsub.f32 %v1041, %v1042
        %v1044 = vand.u32 %v1043, 4294901760
        %1045 = vmatpush1.msra.mxu0 %v1044
        %1046 = vmatprep.subr.mxu0 0.0
        %v1047 = vand.u32 %v193, 4294901760
        %v1048 = vsub.f32 %v193, %v1047
        %v1049 = vand.u32 %v1048, 4294901760
        %v1050 = vsub.f32 %v1048, %v1049
        %v1051 = vand.u32 %v1050, 4294901760
        %1052 = vmatpush1.msra.mxu0 %v1051
        %1053 = vmatprep.subr.mxu0 0.0
        %1054 = vmatpush2.msra.mxu0 0.0
        %1055 = vmatprep.subr.mxu0 0.0
        %1056 = vmatpush2.msra.mxu0 0.0
        %1057 = vmatprep.subr.mxu0 0.0
        %1058 = vmatpush2.msra.mxu0 0.0
        %1059 = vmatprep.subr.mxu0 0.0
        %1060 = vmatpush2.msra.mxu0 0.0
        %1061 = vmatprep.subr.mxu0 0.0
        %1062 = vmatpush2.msra.mxu0 0.0
        %1063 = vmatprep.subr.mxu0 0.0
        %1064 = vmatpush2.msra.mxu0 0.0
        %1065 = vmatprep.subr.mxu0 0.0
        %1066 = vmatpush2.msra.mxu0 0.0
        %1067 = vmatprep.subr.mxu0 0.0
        %1068 = vmatpush2.msra.mxu0 0.0
        %1069 = vmatprep.subr.mxu0 0.0
        %1070 = vmatpush2.msra.mxu0 0.0
        %1071 = vmatprep.subr.mxu0 0.0
        %1072 = vmatpush2.msra.mxu0 0.0
        %1073 = vmatprep.subr.mxu0 0.0
        %1074 = vmatpush2.msra.mxu0 0.0
        %1075 = vmatprep.subr.mxu0 0.0
        %1076 = vmatpush2.msra.mxu0 0.0
        %1077 = vmatprep.subr.mxu0 0.0
        %1078 = vmatpush2.msra.mxu0 0.0
        %1079 = vmatprep.subr.mxu0 0.0
        %1080 = vmatpush2.msra.mxu0 0.0
        %1081 = vmatprep.subr.mxu0 0.0
        %1082 = vmatpush2.msra.mxu0 0.0
        %1083 = vmatprep.subr.mxu0 0.0
        %1084 = vmatpush2.msra.mxu0 0.0
        %1085 = vmatprep.mubr.f32.mxu0 0.0
        %v1086 = vand.u32 %v249, 4294901760
        %1087 = vmatmul.mubr.f32.gmra.mxu0 %v1086
        %v1088 = vpop.f32.mrf.mxu0
        %v1089 = vadd.f32 %v978, %v1088
        %v1090 = vpop.f32.mrf.mxu0
        %1091 = vdwg.mxu0
        %1092 = vmatprep.subr.mxu0 0.0
        %1093 = vmatpush1.msra.mxu0 0.0
        %1094 = vmatprep.subr.mxu0 0.0
        %1095 = vmatpush1.msra.mxu0 0.0
        %1096 = vmatprep.subr.mxu0 0.0
        %1097 = vmatpush1.msra.mxu0 0.0
        %1098 = vmatprep.subr.mxu0 0.0
        %1099 = vmatpush1.msra.mxu0 0.0
        %1100 = vmatprep.subr.mxu0 0.0
        %1101 = vmatpush1.msra.mxu0 0.0
        %1102 = vmatprep.subr.mxu0 0.0
        %1103 = vmatpush1.msra.mxu0 0.0
        %1104 = vmatprep.subr.mxu0 0.0
        %1105 = vmatpush1.msra.mxu0 0.0
        %1106 = vmatprep.subr.mxu0 0.0
        %1107 = vmatpush1.msra.mxu0 0.0
        %1108 = vmatprep.subr.mxu0 0.0
        %v1109 = vand.u32 %v214, 4294901760
        %v1110 = vsub.f32 %v214, %v1109
        %1111 = vmatpush1.msra.mxu0 %v1110
        %1112 = vmatprep.subr.mxu0 0.0
        %v1113 = vand.u32 %v211, 4294901760
        %v1114 = vsub.f32 %v211, %v1113
        %1115 = vmatpush1.msra.mxu0 %v1114
        %1116 = vmatprep.subr.mxu0 0.0
        %v1117 = vand.u32 %v208, 4294901760
        %v1118 = vsub.f32 %v208, %v1117
        %1119 = vmatpush1.msra.mxu0 %v1118
        %1120 = vmatprep.subr.mxu0 0.0
        %v1121 = vand.u32 %v205, 4294901760
        %v1122 = vsub.f32 %v205, %v1121
        %1123 = vmatpush1.msra.mxu0 %v1122
        %1124 = vmatprep.subr.mxu0 0.0
        %v1125 = vand.u32 %v202, 4294901760
        %v1126 = vsub.f32 %v202, %v1125
        %1127 = vmatpush1.msra.mxu0 %v1126
        %1128 = vmatprep.subr.mxu0 0.0
        %v1129 = vand.u32 %v199, 4294901760
        %v1130 = vsub.f32 %v199, %v1129
        %1131 = vmatpush1.msra.mxu0 %v1130
        %1132 = vmatprep.subr.mxu0 0.0
        %v1133 = vand.u32 %v196, 4294901760
        %v1134 = vsub.f32 %v196, %v1133
        %1135 = vmatpush1.msra.mxu0 %v1134
        %1136 = vmatprep.subr.mxu0 0.0
        %v1137 = vand.u32 %v193, 4294901760
        %v1138 = vsub.f32 %v193, %v1137
        %1139 = vmatpush1.msra.mxu0 %v1138
        %1140 = vmatprep.subr.mxu0 0.0
        %1141 = vmatpush2.msra.mxu0 0.0
        %1142 = vmatprep.subr.mxu0 0.0
        %1143 = vmatpush2.msra.mxu0 0.0
        %1144 = vmatprep.subr.mxu0 0.0
        %1145 = vmatpush2.msra.mxu0 0.0
        %1146 = vmatprep.subr.mxu0 0.0
        %1147 = vmatpush2.msra.mxu0 0.0
        %1148 = vmatprep.subr.mxu0 0.0
        %1149 = vmatpush2.msra.mxu0 0.0
        %1150 = vmatprep.subr.mxu0 0.0
        %1151 = vmatpush2.msra.mxu0 0.0
        %1152 = vmatprep.subr.mxu0 0.0
        %1153 = vmatpush2.msra.mxu0 0.0
        %1154 = vmatprep.subr.mxu0 0.0
        %1155 = vmatpush2.msra.mxu0 0.0
        %1156 = vmatprep.subr.mxu0 0.0
        %1157 = vmatpush2.msra.mxu0 0.0
        %1158 = vmatprep.subr.mxu0 0.0
        %1159 = vmatpush2.msra.mxu0 0.0
        %1160 = vmatprep.subr.mxu0 0.0
        %1161 = vmatpush2.msra.mxu0 0.0
        %1162 = vmatprep.subr.mxu0 0.0
        %1163 = vmatpush2.msra.mxu0 0.0
        %1164 = vmatprep.subr.mxu0 0.0
        %1165 = vmatpush2.msra.mxu0 0.0
        %1166 = vmatprep.subr.mxu0 0.0
        %1167 = vmatpush2.msra.mxu0 0.0
        %1168 = vmatprep.subr.mxu0 0.0
        %1169 = vmatpush2.msra.mxu0 0.0
        %1170 = vmatprep.subr.mxu0 0.0
        %1171 = vmatpush2.msra.mxu0 0.0
        %1172 = vmatprep.mubr.f32.mxu0 0.0
        %v1173 = vand.u32 %v249, 4294901760
        %v1174 = vsub.f32 %v249, %v1173
        %1175 = vmatmul.mubr.f32.gmra.mxu0 %v1174
        %v1176 = vpop.f32.mrf.mxu0
        %v1177 = vadd.f32 %v1089, %v1176
        %v1178 = vpop.f32.mrf.mxu0
        %1179 = vdwg.mxu0
        %1180 = vmatprep.subr.mxu0 0.0
        %1181 = vmatpush1.msra.mxu0 0.0
        %1182 = vmatprep.subr.mxu0 0.0
        %1183 = vmatpush1.msra.mxu0 0.0
        %1184 = vmatprep.subr.mxu0 0.0
        %1185 = vmatpush1.msra.mxu0 0.0
        %1186 = vmatprep.subr.mxu0 0.0
        %1187 = vmatpush1.msra.mxu0 0.0
        %1188 = vmatprep.subr.mxu0 0.0
        %1189 = vmatpush1.msra.mxu0 0.0
        %1190 = vmatprep.subr.mxu0 0.0
        %1191 = vmatpush1.msra.mxu0 0.0
        %1192 = vmatprep.subr.mxu0 0.0
        %1193 = vmatpush1.msra.mxu0 0.0
        %1194 = vmatprep.subr.mxu0 0.0
        %1195 = vmatpush1.msra.mxu0 0.0
        %1196 = vmatprep.subr.mxu0 0.0
        %v1197 = vand.u32 %v214, 4294901760
        %1198 = vmatpush1.msra.mxu0 %v1197
        %1199 = vmatprep.subr.mxu0 0.0
        %v1200 = vand.u32 %v211, 4294901760
        %1201 = vmatpush1.msra.mxu0 %v1200
        %1202 = vmatprep.subr.mxu0 0.0
        %v1203 = vand.u32 %v208, 4294901760
        %1204 = vmatpush1.msra.mxu0 %v1203
        %1205 = vmatprep.subr.mxu0 0.0
        %v1206 = vand.u32 %v205, 4294901760
        %1207 = vmatpush1.msra.mxu0 %v1206
        %1208 = vmatprep.subr.mxu0 0.0
        %v1209 = vand.u32 %v202, 4294901760
        %1210 = vmatpush1.msra.mxu0 %v1209
        %1211 = vmatprep.subr.mxu0 0.0
        %v1212 = vand.u32 %v199, 4294901760
        %1213 = vmatpush1.msra.mxu0 %v1212
        %1214 = vmatprep.subr.mxu0 0.0
        %v1215 = vand.u32 %v196, 4294901760
        %1216 = vmatpush1.msra.mxu0 %v1215
        %1217 = vmatprep.subr.mxu0 0.0
        %v1218 = vand.u32 %v193, 4294901760
        %1219 = vmatpush1.msra.mxu0 %v1218
        %1220 = vmatprep.subr.mxu0 0.0
        %1221 = vmatpush2.msra.mxu0 0.0
        %1222 = vmatprep.subr.mxu0 0.0
        %1223 = vmatpush2.msra.mxu0 0.0
        %1224 = vmatprep.subr.mxu0 0.0
        %1225 = vmatpush2.msra.mxu0 0.0
        %1226 = vmatprep.subr.mxu0 0.0
        %1227 = vmatpush2.msra.mxu0 0.0
        %1228 = vmatprep.subr.mxu0 0.0
        %1229 = vmatpush2.msra.mxu0 0.0
        %1230 = vmatprep.subr.mxu0 0.0
        %1231 = vmatpush2.msra.mxu0 0.0
        %1232 = vmatprep.subr.mxu0 0.0
        %1233 = vmatpush2.msra.mxu0 0.0
        %1234 = vmatprep.subr.mxu0 0.0
        %1235 = vmatpush2.msra.mxu0 0.0
        %1236 = vmatprep.subr.mxu0 0.0
        %1237 = vmatpush2.msra.mxu0 0.0
        %1238 = vmatprep.subr.mxu0 0.0
        %1239 = vmatpush2.msra.mxu0 0.0
        %1240 = vmatprep.subr.mxu0 0.0
        %1241 = vmatpush2.msra.mxu0 0.0
        %1242 = vmatprep.subr.mxu0 0.0
        %1243 = vmatpush2.msra.mxu0 0.0
        %1244 = vmatprep.subr.mxu0 0.0
        %1245 = vmatpush2.msra.mxu0 0.0
        %1246 = vmatprep.subr.mxu0 0.0
        %1247 = vmatpush2.msra.mxu0 0.0
        %1248 = vmatprep.subr.mxu0 0.0
        %1249 = vmatpush2.msra.mxu0 0.0
        %1250 = vmatprep.subr.mxu0 0.0
        %1251 = vmatpush2.msra.mxu0 0.0
        %1252 = vmatprep.mubr.f32.mxu0 0.0
        %v1253 = vand.u32 %v249, 4294901760
        %v1254 = vsub.f32 %v249, %v1253
        %v1255 = vand.u32 %v1254, 4294901760
        %1256 = vmatmul.mubr.f32.gmra.mxu0 %v1255
        %v1257 = vpop.f32.mrf.mxu0
        %v1258 = vadd.f32 %v1177, %v1257
        %v1259 = vpop.f32.mrf.mxu0
        %1260 = vdwg.mxu0
        %1261 = vmatprep.subr.mxu0 0.0
        %1262 = vmatpush1.msra.mxu0 0.0
        %1263 = vmatprep.subr.mxu0 0.0
        %1264 = vmatpush1.msra.mxu0 0.0
        %1265 = vmatprep.subr.mxu0 0.0
        %1266 = vmatpush1.msra.mxu0 0.0
        %1267 = vmatprep.subr.mxu0 0.0
        %1268 = vmatpush1.msra.mxu0 0.0
        %1269 = vmatprep.subr.mxu0 0.0
        %1270 = vmatpush1.msra.mxu0 0.0
        %1271 = vmatprep.subr.mxu0 0.0
        %1272 = vmatpush1.msra.mxu0 0.0
        %1273 = vmatprep.subr.mxu0 0.0
        %1274 = vmatpush1.msra.mxu0 0.0
        %1275 = vmatprep.subr.mxu0 0.0
        %1276 = vmatpush1.msra.mxu0 0.0
        %1277 = vmatprep.subr.mxu0 0.0
        %v1278 = vand.u32 %v214, 4294901760
        %v1279 = vsub.f32 %v214, %v1278
        %v1280 = vand.u32 %v1279, 4294901760
        %1281 = vmatpush1.msra.mxu0 %v1280
        %1282 = vmatprep.subr.mxu0 0.0
        %v1283 = vand.u32 %v211, 4294901760
        %v1284 = vsub.f32 %v211, %v1283
        %v1285 = vand.u32 %v1284, 4294901760
        %1286 = vmatpush1.msra.mxu0 %v1285
        %1287 = vmatprep.subr.mxu0 0.0
        %v1288 = vand.u32 %v208, 4294901760
        %v1289 = vsub.f32 %v208, %v1288
        %v1290 = vand.u32 %v1289, 4294901760
        %1291 = vmatpush1.msra.mxu0 %v1290
        %1292 = vmatprep.subr.mxu0 0.0
        %v1293 = vand.u32 %v205, 4294901760
        %v1294 = vsub.f32 %v205, %v1293
        %v1295 = vand.u32 %v1294, 4294901760
        %1296 = vmatpush1.msra.mxu0 %v1295
        %1297 = vmatprep.subr.mxu0 0.0
        %v1298 = vand.u32 %v202, 4294901760
        %v1299 = vsub.f32 %v202, %v1298
        %v1300 = vand.u32 %v1299, 4294901760
        %1301 = vmatpush1.msra.mxu0 %v1300
        %1302 = vmatprep.subr.mxu0 0.0
        %v1303 = vand.u32 %v199, 4294901760
        %v1304 = vsub.f32 %v199, %v1303
        %v1305 = vand.u32 %v1304, 4294901760
        %1306 = vmatpush1.msra.mxu0 %v1305
        %1307 = vmatprep.subr.mxu0 0.0
        %v1308 = vand.u32 %v196, 4294901760
        %v1309 = vsub.f32 %v196, %v1308
        %v1310 = vand.u32 %v1309, 4294901760
        %1311 = vmatpush1.msra.mxu0 %v1310
        %1312 = vmatprep.subr.mxu0 0.0
        %v1313 = vand.u32 %v193, 4294901760
        %v1314 = vsub.f32 %v193, %v1313
        %v1315 = vand.u32 %v1314, 4294901760
        %1316 = vmatpush1.msra.mxu0 %v1315
        %1317 = vmatprep.subr.mxu0 0.0
        %1318 = vmatpush2.msra.mxu0 0.0
        %1319 = vmatprep.subr.mxu0 0.0
        %1320 = vmatpush2.msra.mxu0 0.0
        %1321 = vmatprep.subr.mxu0 0.0
        %1322 = vmatpush2.msra.mxu0 0.0
        %1323 = vmatprep.subr.mxu0 0.0
        %1324 = vmatpush2.msra.mxu0 0.0
        %1325 = vmatprep.subr.mxu0 0.0
        %1326 = vmatpush2.msra.mxu0 0.0
        %1327 = vmatprep.subr.mxu0 0.0
        %1328 = vmatpush2.msra.mxu0 0.0
        %1329 = vmatprep.subr.mxu0 0.0
        %1330 = vmatpush2.msra.mxu0 0.0
        %1331 = vmatprep.subr.mxu0 0.0
        %1332 = vmatpush2.msra.mxu0 0.0
        %1333 = vmatprep.subr.mxu0 0.0
        %1334 = vmatpush2.msra.mxu0 0.0
        %1335 = vmatprep.subr.mxu0 0.0
        %1336 = vmatpush2.msra.mxu0 0.0
        %1337 = vmatprep.subr.mxu0 0.0
        %1338 = vmatpush2.msra.mxu0 0.0
        %1339 = vmatprep.subr.mxu0 0.0
        %1340 = vmatpush2.msra.mxu0 0.0
        %1341 = vmatprep.subr.mxu0 0.0
        %1342 = vmatpush2.msra.mxu0 0.0
        %1343 = vmatprep.subr.mxu0 0.0
        %1344 = vmatpush2.msra.mxu0 0.0
        %1345 = vmatprep.subr.mxu0 0.0
        %1346 = vmatpush2.msra.mxu0 0.0
        %1347 = vmatprep.subr.mxu0 0.0
        %1348 = vmatpush2.msra.mxu0 0.0
        %1349 = vmatprep.mubr.f32.mxu0 0.0
        %v1350 = vand.u32 %v249, 4294901760
        %1351 = vmatmul.mubr.f32.gmra.mxu0 %v1350
        %v1352 = vpop.f32.mrf.mxu0
        %v1353 = vadd.f32 %v1258, %v1352
        %v1354 = vpop.f32.mrf.mxu0
        %1355 = vdwg.mxu0
        %1356 = vmatprep.subr.mxu0 0.0
        %1357 = vmatpush1.msra.mxu0 0.0
        %1358 = vmatprep.subr.mxu0 0.0
        %1359 = vmatpush1.msra.mxu0 0.0
        %1360 = vmatprep.subr.mxu0 0.0
        %1361 = vmatpush1.msra.mxu0 0.0
        %1362 = vmatprep.subr.mxu0 0.0
        %1363 = vmatpush1.msra.mxu0 0.0
        %1364 = vmatprep.subr.mxu0 0.0
        %1365 = vmatpush1.msra.mxu0 0.0
        %1366 = vmatprep.subr.mxu0 0.0
        %1367 = vmatpush1.msra.mxu0 0.0
        %1368 = vmatprep.subr.mxu0 0.0
        %1369 = vmatpush1.msra.mxu0 0.0
        %1370 = vmatprep.subr.mxu0 0.0
        %1371 = vmatpush1.msra.mxu0 0.0
        %1372 = vmatprep.subr.mxu0 0.0
        %v1373 = vand.u32 %v214, 4294901760
        %1374 = vmatpush1.msra.mxu0 %v1373
        %1375 = vmatprep.subr.mxu0 0.0
        %v1376 = vand.u32 %v211, 4294901760
        %1377 = vmatpush1.msra.mxu0 %v1376
        %1378 = vmatprep.subr.mxu0 0.0
        %v1379 = vand.u32 %v208, 4294901760
        %1380 = vmatpush1.msra.mxu0 %v1379
        %1381 = vmatprep.subr.mxu0 0.0
        %v1382 = vand.u32 %v205, 4294901760
        %1383 = vmatpush1.msra.mxu0 %v1382
        %1384 = vmatprep.subr.mxu0 0.0
        %v1385 = vand.u32 %v202, 4294901760
        %1386 = vmatpush1.msra.mxu0 %v1385
        %1387 = vmatprep.subr.mxu0 0.0
        %v1388 = vand.u32 %v199, 4294901760
        %1389 = vmatpush1.msra.mxu0 %v1388
        %1390 = vmatprep.subr.mxu0 0.0
        %v1391 = vand.u32 %v196, 4294901760
        %1392 = vmatpush1.msra.mxu0 %v1391
        %1393 = vmatprep.subr.mxu0 0.0
        %v1394 = vand.u32 %v193, 4294901760
        %1395 = vmatpush1.msra.mxu0 %v1394
        %1396 = vmatprep.subr.mxu0 0.0
        %1397 = vmatpush2.msra.mxu0 0.0
        %1398 = vmatprep.subr.mxu0 0.0
        %1399 = vmatpush2.msra.mxu0 0.0
        %1400 = vmatprep.subr.mxu0 0.0
        %1401 = vmatpush2.msra.mxu0 0.0
        %1402 = vmatprep.subr.mxu0 0.0
        %1403 = vmatpush2.msra.mxu0 0.0
        %1404 = vmatprep.subr.mxu0 0.0
        %1405 = vmatpush2.msra.mxu0 0.0
        %1406 = vmatprep.subr.mxu0 0.0
        %1407 = vmatpush2.msra.mxu0 0.0
        %1408 = vmatprep.subr.mxu0 0.0
        %1409 = vmatpush2.msra.mxu0 0.0
        %1410 = vmatprep.subr.mxu0 0.0
        %1411 = vmatpush2.msra.mxu0 0.0
        %1412 = vmatprep.subr.mxu0 0.0
        %1413 = vmatpush2.msra.mxu0 0.0
        %1414 = vmatprep.subr.mxu0 0.0
        %1415 = vmatpush2.msra.mxu0 0.0
        %1416 = vmatprep.subr.mxu0 0.0
        %1417 = vmatpush2.msra.mxu0 0.0
        %1418 = vmatprep.subr.mxu0 0.0
        %1419 = vmatpush2.msra.mxu0 0.0
        %1420 = vmatprep.subr.mxu0 0.0
        %1421 = vmatpush2.msra.mxu0 0.0
        %1422 = vmatprep.subr.mxu0 0.0
        %1423 = vmatpush2.msra.mxu0 0.0
        %1424 = vmatprep.subr.mxu0 0.0
        %1425 = vmatpush2.msra.mxu0 0.0
        %1426 = vmatprep.subr.mxu0 0.0
        %1427 = vmatpush2.msra.mxu0 0.0
        %1428 = vmatprep.mubr.f32.mxu0 0.0
        %v1429 = vand.u32 %v249, 4294901760
        %1430 = vmatmul.mubr.f32.gmra.mxu0 %v1429
        %v1431 = vpop.f32.mrf.mxu0
        %v1432 = vadd.f32 %v1353, %v1431
        %v1433 = vpop.f32.mrf.mxu0
        %1434 = vdwg.mxu0
        %1435 = vst [vmem:[%s152] sm:$0xff] %v894
        %1436 = vst [vmem:[%s152 + $0x8] sm:$0xff] %v896
        %1437 = vst [vmem:[%s152 + $0x10] sm:$0xff] %v1432
        %p1438 = scmp.lt.s32.totalorder %s14, 1
        %s1439 = scalar_select %p1438, %s14, 1
        %s1440 = smul.addr %s1439, 3
        %s1441 = smul.addr %s1440, 8
        %s1442 = scalar_lea.vmem %s2, %s1441
        // Predicated region
        $region33: #{tagnet_forward.1} parent=27 // pred_check
          %p1443 = pneg %p79
        $region34: #{tagnet_forward.1} parent=27 // pred_check_branch
          %1445 = sbr.rel (%p1443) target = $region36
        $region35: #{tagnet_forward.1} parent=27 // pred_region
          _
        $region36: #{tagnet_forward.1} parent=27 // pred_fallthru
          _
      $region28: #{tagnet_forward.1} parent=5 // pred_fallthru
        _
      %p1446 = scmp.le.s32.totalorder 2, %s9
      // Predicated region
      $region37: #{tagnet_forward.1} parent=5 // pred_check
        %p1447 = pneg %p1446
      $region38: #{tagnet_forward.1} parent=5 // pred_check_branch
        %1449 = sbr.rel (%p1447) target = $region40
      $region39: #{tagnet_forward.1} parent=5 // pred_region
        %s1450 = ssub.s32 %s9, 2
        // Predicated region
        $region41: #{tagnet_forward.1} parent=39 // pred_check
          %p1451 = pneg %p85
        $region42: #{tagnet_forward.1} parent=39 // pred_check_branch
          %1453 = sbr.rel (%p1451) target = $region44
        $region43: #{tagnet_forward.1} parent=39 // pred_region
          %p1454 = scmp.lt.s32.totalorder %s15, 1
          %s1455 = scalar_select %p1454, %s15, 1
          %s1456 = smul.addr %s1455, 3
          %s1457 = smul.addr %s1456, 8
          %s1458 = scalar_lea.vmem %s2, %s1457
        $region44: #{tagnet_forward.1} parent=39 // pred_fallthru
          _
      $region40: #{tagnet_forward.1} parent=5 // pred_fallthru
        _
    $region6: #{tagnet_forward.1} parent=1 // loop_footer
      %s13 = sadd.s32 1, %s9
    $region7: #{tagnet_forward.1} parent=1 // loop_footer_branch
      %8 = sbr.rel target = $region3
    $region8: #{tagnet_forward.1} parent=1 // loop_exit
      _
    %1459 = vsyncpa [#allocation3], 1
    %s1460 = scalar_lea.sflag [#allocation3], 1
    %1461 = vsyncpa %s1460, 1

</llo_original>
